<compile_context>
chip_gen: v5e
topology: v5e:2x2
jax: 0.10.0
libtpu: 0.0.40
codegen_flags: <defaults>
</compile_context>

<pallas_src>
import functools

import jax
import jax.numpy as jnp
from jax.experimental import pallas as pl
from jax.experimental.pallas import tpu as pltpu

_LANE = 128      # vreg lane width: feature dims are zero-padded to a multiple of this
_SUBLANE = 8     # f32 sublane width: batch tiles are multiples of this


def _round_up(x, m):
    return (x + m - 1) // m * m


def _softplus(x):
    # Matches torch.nn.Softplus(beta=1, threshold=20): linear above the threshold.
    return jnp.where(x > 20.0, x, jnp.log1p(jnp.exp(jnp.minimum(x, 20.0))))


# ---------------------------------------------------------------------------
# Parameters
# ---------------------------------------------------------------------------
def init_params(key, input_size, output_size, hidden_sizes):
    """Deterministic PyTorch-style init: U(-1/sqrt(fan_in), 1/sqrt(fan_in)), f32."""
    dims = [input_size] + list(hidden_sizes) + [output_size]
    params = []
    for d_in, d_out in zip(dims[:-1], dims[1:]):
        key, kw, kb = jax.random.split(key, 3)
        bound = 1.0 / jnp.sqrt(jnp.float32(d_in))
        w = jax.random.uniform(kw, (d_in, d_out), jnp.float32, -bound, bound)
        b = jax.random.uniform(kb, (d_out,), jnp.float32, -bound, bound)
        params += [w, b]
    return params


def pack_params(params):
    """Zero-pad every Linear to lane-dense multiples of 128 and cast W -> bf16.

    Done ONCE per model (hoisted out of the forward path).  Zero padding is exact:
    padded input columns hit zero weight rows, padded output columns get zero weight
    + zero bias and are ignored (zero weight rows) by the next layer.
    """
    num_linear = len(params) // 2
    packed = []
    for li in range(num_linear):
        w = params[2 * li]
        b = params[2 * li + 1].reshape(1, -1)
        d_in, d_out = w.shape
        d_in_pad = _round_up(d_in, _LANE)
        d_out_pad = _round_up(d_out, _LANE)
        w_p = jnp.pad(w.astype(jnp.bfloat16),
                      ((0, d_in_pad - d_in), (0, d_out_pad - d_out)))
        b_p = jnp.pad(b.astype(jnp.float32), ((0, 0), (0, d_out_pad - d_out)))
        packed += [w_p, b_p]
    return packed


# ---------------------------------------------------------------------------
# Kernel
# ---------------------------------------------------------------------------
def _make_mlp_kernel(num_linear, num_chunks, chunk_rows):
    """Kernel body for one batch tile: x_tile(bf16), (W0,b0), ..., (W_mu,b_mu), out_tile.

    The batch tile is processed as `num_chunks` independent row sub-chunks so one chunk's
    softplus (EUP transcendentals) drains while the other chunk's matmul issues on the MXU.
    """

    def kernel(*refs):
        x_ref = refs[0]
        out_ref = refs[-1]
        wb_refs = refs[1:-1]
        assert len(wb_refs) == 2 * num_linear

        for c in range(num_chunks):            # unrolled: independent chains overlap EUP/MXU
            rows = pl.ds(c * chunk_rows, chunk_rows)
            h = x_ref[rows, :]                 # bf16, fed straight to the MXU
            for i in range(num_linear):
                w = wb_refs[2 * i][...]        # bf16 [d_in_pad, d_out_pad], VMEM-resident
                b = wb_refs[2 * i + 1][...]    # f32  [1, d_out_pad], broadcasts over rows
                # bf16 MXU operands, f32 accumulation; elementwise math stays f32
                # (v5e VPU/EUP have no bf16 path).
                z = jnp.dot(h, w, preferred_element_type=jnp.float32) + b
                if i < num_linear - 1:
                    # Activation after input layer and every hidden layer (not after f_mu).
                    h = _softplus(z).astype(jnp.bfloat16)
                else:
                    h = z
            # TODO(synk): nn.Dropout(p) with PyTorch-matching RNG has no clean equivalent;
            # implemented as eval-mode identity.
            out_ref[rows, :] = h.astype(out_ref.dtype)

    return kernel


# ---------------------------------------------------------------------------
# Generation-aware sizing
# ---------------------------------------------------------------------------
@functools.lru_cache(maxsize=None)
def _physical_vmem_bytes():
    try:
        return int(pltpu.get_tpu_info().vmem_capacity_bytes)
    except Exception:
        return 64 * 1024 * 1024     # v7x-safe assumption if the query is unavailable


def _choose_tile_m(batch, widest_pad, phys_vmem):
    # Very wide layers + small (v7x-style) VMEM: cap the tile so activations don't spill.
    cap = 256 if (widest_pad >= 4096 and phys_vmem <= 64 * 1024 * 1024) else 512
    if batch <= 2 * _SUBLANE:
        return _round_up(batch, _SUBLANE)
    # Largest tile whose round-up waste is small and that leaves >= 2 grid steps
    # (so both v7x TensorCores get work; harmless on v5e/v6e).
    for t in (512, 256, 128, 64, 32, 16):
        if t > cap:
            continue
        padded = _round_up(batch, t)
        if padded - batch > max(batch // 8, _SUBLANE):
            continue                # too much wasted MXU work / output DMA
        if padded // t < 2:
            continue                # single-step grid leaves one v7x TC idle
        return t
    return _SUBLANE                 # fallback: minimal padding, small tiles


def _vmem_limit_bytes(tile_m, in_pad, out_pads, out_pad, phys_vmem):
    # Single-buffered resident weights + biases.
    wbytes = 0
    d_prev = in_pad
    for d in out_pads:
        wbytes += d_prev * d * 2 + d * 4
        d_prev = d
    # Double-buffered streaming x (bf16) and mu_pre (f32) tiles.
    io = 2 * tile_m * in_pad * 2 + 2 * tile_m * out_pad * 4
    # Live activations at the widest layer: f32 accumulator + bf16 MXU copy.
    widest = max([in_pad] + list(out_pads))
    act = tile_m * widest * (4 + 2)
    est = int((wbytes + io + act) * 1.5) + (8 << 20)   # headroom for compiler scratch
    cap = phys_vmem * 3 // 4        # ~48 MiB on v7x, ~96 MiB on v5e/v6e
    return max(min(est, cap), min(32 << 20, cap))


# ---------------------------------------------------------------------------
# Forward
# ---------------------------------------------------------------------------
@functools.partial(jax.jit, static_argnames=("output_size",))
def inference_network_forward(x, packed_params, *, output_size):
    """mu = BatchNorm1d(affine=False, batch stats)( softplus-MLP(x) ) with packed params."""
    batch, in_features = x.shape
    num_linear = len(packed_params) // 2
    in_pad = packed_params[0].shape[0]
    out_pads = [packed_params[2 * li].shape[1] for li in range(num_linear)]
    out_pad = out_pads[-1]

    phys_vmem = _physical_vmem_bytes()
    widest_pad = max([in_pad] + out_pads)
    tile_m = _choose_tile_m(batch, widest_pad, phys_vmem)
    padded_batch = _round_up(batch, tile_m)
    grid = (padded_batch // tile_m,)

    # x is consumed only as an MXU operand: stream it as bf16 (halves the x DMA) and only
    # materialize a padded copy when the shape isn't already lane/tile aligned.
    x_b = x.astype(jnp.bfloat16)
    if padded_batch == batch and in_pad == in_features:
        x_p = x_b
    else:
        x_p = jnp.pad(x_b, ((0, padded_batch - batch), (0, in_pad - in_features)))

    # Two row sub-chunks per tile so one chunk's softplus overlaps the other's matmul.
    if tile_m >= 16 and tile_m % 16 == 0:
        num_chunks, chunk_rows = 2, tile_m // 2
    else:
        num_chunks, chunk_rows = 1, tile_m

    in_specs = [pl.BlockSpec((tile_m, in_pad), lambda i: (i, 0))]
    for li in range(num_linear):
        w_shape = packed_params[2 * li].shape
        b_shape = packed_params[2 * li + 1].shape
        # Constant index map + single buffer: weights/biases stay VMEM-resident across all
        # grid steps without paying the default 2x double-buffering footprint.
        in_specs.append(pl.BlockSpec(w_shape, lambda i: (0, 0),
                                     pipeline_mode=pl.Buffered(1)))
        in_specs.append(pl.BlockSpec(b_shape, lambda i: (0, 0),
                                     pipeline_mode=pl.Buffered(1)))

    # TODO(synk): if summed padded weight bytes ever exceed the VMEM budget (hidden widths
    # ~2-4k on v7x), fall back to tiling the output-feature dim as a second grid axis.
    vmem_limit = _vmem_limit_bytes(tile_m, in_pad, out_pads, out_pad, phys_vmem)

    mu_pre_padded = pl.pallas_call(
        _make_mlp_kernel(num_linear, num_chunks, chunk_rows),
        out_shape=jax.ShapeDtypeStruct((padded_batch, out_pad), jnp.float32),
        grid=grid,
        in_specs=in_specs,
        out_specs=pl.BlockSpec((tile_m, out_pad), lambda i: (i, 0)),
        compiler_params=pltpu.CompilerParams(
            # Batch tiles are independent (BN is outside the kernel): the batch axis can
            # shard across the 2 TensorCores on v7x; harmless on v5e/v6e.
            dimension_semantics=("parallel",),
            vmem_limit_bytes=vmem_limit,
        ),
    )(x_p, *packed_params)

    # BatchNorm1d(output_size, affine=False), training semantics (batch statistics, biased
    # variance, eps=1e-5), on the unpadded mu_pre so the statistics stay exact under tiling.
    mu_pre = mu_pre_padded[:batch, :output_size]
    mean = jnp.mean(mu_pre, axis=0, keepdims=True)
    var = jnp.mean(jnp.square(mu_pre - mean), axis=0, keepdims=True)
    return (mu_pre - mean) * jax.lax.rsqrt(var + 1e-5)


def _reference_forward(x, params):
    """Pure-JAX reference with the same dtype flow (bf16 MXU operands, f32 accumulation)."""
    num_linear = len(params) // 2
    h = x.astype(jnp.bfloat16)
    for i in range(num_linear):
        w = params[2 * i].astype(jnp.bfloat16)
        b = params[2 * i + 1].reshape(1, -1).astype(jnp.float32)
        z = jnp.dot(h, w, preferred_element_type=jnp.float32) + b
        h = _softplus(z).astype(jnp.bfloat16) if i < num_linear - 1 else z
    mean = jnp.mean(h, axis=0, keepdims=True)
    var = jnp.mean(jnp.square(h - mean), axis=0, keepdims=True)
    return (h - mean) / jnp.sqrt(var + 1e-5)


if __name__ == "__main__":
    key = jax.random.PRNGKey(0)

    input_size, hidden_sizes, output_size = 32, (64, 32), 16
    key, kp = jax.random.split(key)
    params = init_params(kp, input_size, output_size, hidden_sizes)
    packed = pack_params(params)       # one-time packing, reused across forward calls

    # batch=8 exercises the single-tile path; batch=48 exercises multi-step grid,
    # batch padding, and the 2-chunk EUP/MXU-overlap path.
    for batch in (8, 48):
        key, kx = jax.random.split(key)
        x = jax.random.normal(kx, (batch, input_size), jnp.float32)
        mu = jax.block_until_ready(
            inference_network_forward(x, packed, output_size=output_size))
        ref = _reference_forward(x, params)
        assert mu.shape == (batch, output_size)
        assert jnp.allclose(mu, ref, atol=3e-3, rtol=3e-3), "mismatch vs reference"

    print("KERNEL_OK")
</pallas_src>

<mosaic_0001>
module attributes {stable_mosaic.version = 11 : i64} {
  func.func @kernel(%arg0: i32, %arg1: memref<8x128xbf16, #tpu.memory_space<vmem>>, %arg2: memref<128x128xbf16, #tpu.memory_space<vmem>>, %arg3: memref<1x128xf32, #tpu.memory_space<vmem>>, %arg4: memref<128x128xbf16, #tpu.memory_space<vmem>>, %arg5: memref<1x128xf32, #tpu.memory_space<vmem>>, %arg6: memref<128x128xbf16, #tpu.memory_space<vmem>>, %arg7: memref<1x128xf32, #tpu.memory_space<vmem>>, %arg8: memref<8x128xf32, #tpu.memory_space<vmem>>) attributes {dimension_semantics = [#tpu.dimension_semantics<parallel>], iteration_bounds = array<i64: 1>, scalar_prefetch = 0 : i64, scratch_operands = 0 : i64, tpu.core_type = #tpu.core_type<tc>, window_params = [{transform_indices = @transform_0, window_bounds = array<i64: 8, 128>}, {pipeline_mode = #tpu.pipeline_mode<synchronous>, transform_indices = @transform_1, window_bounds = array<i64: 128, 128>}, {pipeline_mode = #tpu.pipeline_mode<synchronous>, transform_indices = @transform_2, window_bounds = array<i64: 1, 128>}, {pipeline_mode = #tpu.pipeline_mode<synchronous>, transform_indices = @transform_3, window_bounds = array<i64: 128, 128>}, {pipeline_mode = #tpu.pipeline_mode<synchronous>, transform_indices = @transform_4, window_bounds = array<i64: 1, 128>}, {pipeline_mode = #tpu.pipeline_mode<synchronous>, transform_indices = @transform_5, window_bounds = array<i64: 128, 128>}, {pipeline_mode = #tpu.pipeline_mode<synchronous>, transform_indices = @transform_6, window_bounds = array<i64: 1, 128>}, {transform_indices = @transform_7, window_bounds = array<i64: 8, 128>}]} {
    %c0 = arith.constant 0 : index
    %c0_0 = arith.constant 0 : index
    %0 = vector.load %arg1[%c0, %c0_0] : memref<8x128xbf16, #tpu.memory_space<vmem>>, vector<8x128xbf16>
    %c0_1 = arith.constant 0 : index
    %c0_2 = arith.constant 0 : index
    %1 = vector.load %arg2[%c0_1, %c0_2] : memref<128x128xbf16, #tpu.memory_space<vmem>>, vector<128x128xbf16>
    %c0_3 = arith.constant 0 : index
    %c0_4 = arith.constant 0 : index
    %2 = vector.load %arg3[%c0_3, %c0_4] : memref<1x128xf32, #tpu.memory_space<vmem>>, vector<1x128xf32>
    %cst = arith.constant dense<0.000000e+00> : vector<8x128xf32>
    %3 = tpu.matmul %0, %1, %cst {dimension_numbers = #tpu.dot_dimension_numbers<[1], [0], [0], [1], [0, 0, 1, 1], [], []>} : vector<8x128xbf16>, vector<128x128xbf16>, vector<8x128xf32> -> vector<8x128xf32>
    %4 = vector.broadcast %2 : vector<1x128xf32> to vector<8x128xf32>
    %5 = arith.addf %3, %4 : vector<8x128xf32>
    %cst_5 = arith.constant 2.000000e+01 : f32
    %6 = vector.broadcast %cst_5 : f32 to vector<8x128xf32>
    %7 = arith.cmpf ogt, %5, %6 : vector<8x128xf32>
    %cst_6 = arith.constant 2.000000e+01 : f32
    %8 = vector.broadcast %cst_6 : f32 to vector<8x128xf32>
    %9 = arith.minimumf %5, %8 : vector<8x128xf32>
    %10 = math.exp %9 : vector<8x128xf32>
    %11 = math.log1p %10 : vector<8x128xf32>
    %12 = arith.select %7, %5, %11 : vector<8x128xi1>, vector<8x128xf32>
    %13 = arith.truncf %12 : vector<8x128xf32> to vector<8x128xbf16>
    %c0_7 = arith.constant 0 : index
    %c0_8 = arith.constant 0 : index
    %14 = vector.load %arg4[%c0_7, %c0_8] : memref<128x128xbf16, #tpu.memory_space<vmem>>, vector<128x128xbf16>
    %c0_9 = arith.constant 0 : index
    %c0_10 = arith.constant 0 : index
    %15 = vector.load %arg5[%c0_9, %c0_10] : memref<1x128xf32, #tpu.memory_space<vmem>>, vector<1x128xf32>
    %cst_11 = arith.constant dense<0.000000e+00> : vector<8x128xf32>
    %16 = tpu.matmul %13, %14, %cst_11 {dimension_numbers = #tpu.dot_dimension_numbers<[1], [0], [0], [1], [0, 0, 1, 1], [], []>} : vector<8x128xbf16>, vector<128x128xbf16>, vector<8x128xf32> -> vector<8x128xf32>
    %17 = vector.broadcast %15 : vector<1x128xf32> to vector<8x128xf32>
    %18 = arith.addf %16, %17 : vector<8x128xf32>
    %cst_12 = arith.constant 2.000000e+01 : f32
    %19 = vector.broadcast %cst_12 : f32 to vector<8x128xf32>
    %20 = arith.cmpf ogt, %18, %19 : vector<8x128xf32>
    %cst_13 = arith.constant 2.000000e+01 : f32
    %21 = vector.broadcast %cst_13 : f32 to vector<8x128xf32>
    %22 = arith.minimumf %18, %21 : vector<8x128xf32>
    %23 = math.exp %22 : vector<8x128xf32>
    %24 = math.log1p %23 : vector<8x128xf32>
    %25 = arith.select %20, %18, %24 : vector<8x128xi1>, vector<8x128xf32>
    %26 = arith.truncf %25 : vector<8x128xf32> to vector<8x128xbf16>
    %c0_14 = arith.constant 0 : index
    %c0_15 = arith.constant 0 : index
    %27 = vector.load %arg6[%c0_14, %c0_15] : memref<128x128xbf16, #tpu.memory_space<vmem>>, vector<128x128xbf16>
    %c0_16 = arith.constant 0 : index
    %c0_17 = arith.constant 0 : index
    %28 = vector.load %arg7[%c0_16, %c0_17] : memref<1x128xf32, #tpu.memory_space<vmem>>, vector<1x128xf32>
    %cst_18 = arith.constant dense<0.000000e+00> : vector<8x128xf32>
    %29 = tpu.matmul %26, %27, %cst_18 {dimension_numbers = #tpu.dot_dimension_numbers<[1], [0], [0], [1], [0, 0, 1, 1], [], []>} : vector<8x128xbf16>, vector<128x128xbf16>, vector<8x128xf32> -> vector<8x128xf32>
    %30 = vector.broadcast %28 : vector<1x128xf32> to vector<8x128xf32>
    %31 = arith.addf %29, %30 : vector<8x128xf32>
    %c0_19 = arith.constant 0 : index
    %c0_20 = arith.constant 0 : index
    %32 = vector.load %arg8[%c0_19, %c0_20] : memref<8x128xf32, #tpu.memory_space<vmem>>, vector<8x128xf32>
    tpu.vector_store %arg8[%c0_19, %c0_20], %31 {strides = array<i32>} : memref<8x128xf32, #tpu.memory_space<vmem>>, vector<8x128xf32>,
    return
  }
  func.func @transform_0(%arg0: i32) -> (i32, i32) {
    %c0_i32 = arith.constant 0 : i32
    %c0_i32_0 = arith.constant 0 : i32
    return %arg0, %c0_i32 : i32, i32
  }
  func.func @transform_1(%arg0: i32) -> (i32, i32) {
    %c0_i32 = arith.constant 0 : i32
    %c0_i32_0 = arith.constant 0 : i32
    %c0_i32_1 = arith.constant 0 : i32
    return %c0_i32, %c0_i32_0 : i32, i32
  }
  func.func @transform_2(%arg0: i32) -> (i32, i32) {
    %c0_i32 = arith.constant 0 : i32
    %c0_i32_0 = arith.constant 0 : i32
    %c0_i32_1 = arith.constant 0 : i32
    return %c0_i32, %c0_i32_0 : i32, i32
  }
  func.func @transform_3(%arg0: i32) -> (i32, i32) {
    %c0_i32 = arith.constant 0 : i32
    %c0_i32_0 = arith.constant 0 : i32
    %c0_i32_1 = arith.constant 0 : i32
    return %c0_i32, %c0_i32_0 : i32, i32
  }
  func.func @transform_4(%arg0: i32) -> (i32, i32) {
    %c0_i32 = arith.constant 0 : i32
    %c0_i32_0 = arith.constant 0 : i32
    %c0_i32_1 = arith.constant 0 : i32
    return %c0_i32, %c0_i32_0 : i32, i32
  }
  func.func @transform_5(%arg0: i32) -> (i32, i32) {
    %c0_i32 = arith.constant 0 : i32
    %c0_i32_0 = arith.constant 0 : i32
    %c0_i32_1 = arith.constant 0 : i32
    return %c0_i32, %c0_i32_0 : i32, i32
  }
  func.func @transform_6(%arg0: i32) -> (i32, i32) {
    %c0_i32 = arith.constant 0 : i32
    %c0_i32_0 = arith.constant 0 : i32
    %c0_i32_1 = arith.constant 0 : i32
    return %c0_i32, %c0_i32_0 : i32, i32
  }
  func.func @transform_7(%arg0: i32) -> (i32, i32) {
    %c0_i32 = arith.constant 0 : i32
    %c0_i32_0 = arith.constant 0 : i32
    return %arg0, %c0_i32 : i32, i32
  }
}

</mosaic_0001>

<llo_original>
// kernel: inference_network_forward.1
$region0: #{inference_network_forward.1}
  #allocation0 [shape = 'u32[]', space=smem, size = 0x4, offset = 0x4, fixed_abs, tag = 'smem constant byte address 0x4 - core index']
  #allocation1 [shape = 'u32[72,128]{1,0:T(1,128)}', space=vmem, size = 0x9000, scoped, tag = 'internal scratch']
  %s0 = inlined_call_operand.vmem [shape: bf16[8,128], index: 0, kind: input, shape index: {}]
  %s1 = inlined_call_operand.hbm [shape: bf16[128,128], index: 1, kind: input, shape index: {}]
  %s2 = inlined_call_operand.vmem [shape: f32[1,128], index: 2, kind: input, shape index: {}]
  %s3 = inlined_call_operand.hbm [shape: bf16[128,128], index: 3, kind: input, shape index: {}]
  %s4 = inlined_call_operand.vmem [shape: f32[1,128], index: 4, kind: input, shape index: {}]
  %s5 = inlined_call_operand.hbm [shape: bf16[128,128], index: 5, kind: input, shape index: {}]
  %s6 = inlined_call_operand.vmem [shape: f32[1,128], index: 6, kind: input, shape index: {}]
  %s7 = inlined_call_operand.vmem [shape: f32[8,128], index: 7, kind: output, shape index: {}]
  %s8 = sld [smem:[#allocation0]]
  $region50: #{inference_network_forward.1} parent=0
    _
  %s10 = ssub.s32 1, %s8
  %s11 = scalar_select 0, %s10, %s8
  $region1: #{inference_network_forward.1} parent=0
    #allocation2 [shape = 'u8[32768]{0}', space=vmem, size = 0x8000, scoped, tag = 'input window, operand 1, single buffered']
    #allocation3 [shape = 's32[1]{0}', space=sflag, size = 0x4, scoped, tag = 'scoped memory for inference_network_forward.1']
    #allocation4 [shape = 'u8[32768]{0}', space=vmem, size = 0x8000, scoped, tag = 'input window, operand 3, single buffered']
    #allocation5 [shape = 's32[1]{0}', space=sflag, size = 0x4, scoped, tag = 'scoped memory for inference_network_forward.1']
    #allocation6 [shape = 'u8[32768]{0}', space=vmem, size = 0x8000, scoped, tag = 'input window, operand 5, single buffered']
    %12 = vsyncpa [#allocation3], 0
    %13 = vsyncpa [#allocation5], 0
    // Predicated region
    $region2: #{inference_network_forward.1} parent=1 // pred_check
      _
    $region3: #{inference_network_forward.1} parent=1 // pred_check_branch
      %15 = sbr.rel (0) target = $region5
    $region4: #{inference_network_forward.1} parent=1 // pred_region
      _
    $region5: #{inference_network_forward.1} parent=1 // pred_fallthru
      _
    // Predicated region
    $region6: #{inference_network_forward.1} parent=1 // pred_check
      _
    $region7: #{inference_network_forward.1} parent=1 // pred_check_branch
      %17 = sbr.rel (0) target = $region9
    $region8: #{inference_network_forward.1} parent=1 // pred_region
      %19 = vsyncadd [#allocation3], 0
      %s20 = sshll.u32 %s1, 4
      %s21 = int_to_ptr.hbm [resolvable:$true] %s20
      %s22 = sshll.u32 [#allocation2], 4
      %s23 = int_to_ptr.vmem [resolvable:$true] %s22
      %28 = dma.hbm_to_vmem [thread:$0]  %s21, 1024, %s23, [#allocation3], 64, 64, 4
    $region9: #{inference_network_forward.1} parent=1 // pred_fallthru
      _
    // Predicated region
    $region10: #{inference_network_forward.1} parent=1 // pred_check
      _
    $region11: #{inference_network_forward.1} parent=1 // pred_check_branch
      %30 = sbr.rel (0) target = $region13
    $region12: #{inference_network_forward.1} parent=1 // pred_region
      _
    $region13: #{inference_network_forward.1} parent=1 // pred_fallthru
      _
    // Predicated region
    $region14: #{inference_network_forward.1} parent=1 // pred_check
      _
    $region15: #{inference_network_forward.1} parent=1 // pred_check_branch
      %32 = sbr.rel (0) target = $region17
    $region16: #{inference_network_forward.1} parent=1 // pred_region
      %34 = vsyncadd [#allocation5], 0
      %s35 = sshll.u32 %s3, 4
      %s36 = int_to_ptr.hbm [resolvable:$true] %s35
      %s37 = sshll.u32 [#allocation4], 4
      %s38 = int_to_ptr.vmem [resolvable:$true] %s37
      %43 = dma.hbm_to_vmem [thread:$0]  %s36, 1024, %s38, [#allocation5], 64, 64, 4
    $region17: #{inference_network_forward.1} parent=1 // pred_fallthru
      _
    // Predicated region
    $region18: #{inference_network_forward.1} parent=1 // pred_check
      _
    $region19: #{inference_network_forward.1} parent=1 // pred_check_branch
      %45 = sbr.rel (0) target = $region21
    $region20: #{inference_network_forward.1} parent=1 // pred_region
      _
    $region21: #{inference_network_forward.1} parent=1 // pred_fallthru
      _
    // Predicated region
    $region22: #{inference_network_forward.1} parent=1 // pred_check
      _
    $region23: #{inference_network_forward.1} parent=1 // pred_check_branch
      %47 = sbr.rel (0) target = $region25
    $region24: #{inference_network_forward.1} parent=1 // pred_region
      %49 = vsyncadd [#allocation5], 0
      %s50 = sshll.u32 %s5, 4
      %s51 = int_to_ptr.hbm [resolvable:$true] %s50
      %s52 = sshll.u32 [#allocation6], 4
      %s53 = int_to_ptr.vmem [resolvable:$true] %s52
      %58 = dma.hbm_to_vmem [thread:$0]  %s51, 1024, %s53, [#allocation5], 64, 64, 4
    $region25: #{inference_network_forward.1} parent=1 // pred_fallthru
      _
    // Predicated region
    $region26: #{inference_network_forward.1} parent=1 // pred_check
      _
    $region27: #{inference_network_forward.1} parent=1 // pred_check_branch
      %60 = sbr.rel (0) target = $region29
    $region28: #{inference_network_forward.1} parent=1 // pred_region
      _
    $region29: #{inference_network_forward.1} parent=1 // pred_fallthru
      _
    // Predicated region
    $region30: #{inference_network_forward.1} parent=1 // pred_check
      _
    $region31: #{inference_network_forward.1} parent=1 // pred_check_branch
      %62 = sbr.rel (0) target = $region33
    $region32: #{inference_network_forward.1} parent=1 // pred_region
      %64 = dma.done [#allocation3], 1024
    $region33: #{inference_network_forward.1} parent=1 // pred_fallthru
      _
    // Predicated region
    $region34: #{inference_network_forward.1} parent=1 // pred_check
      _
    $region35: #{inference_network_forward.1} parent=1 // pred_check_branch
      %66 = sbr.rel (0) target = $region37
    $region36: #{inference_network_forward.1} parent=1 // pred_region
      %68 = dma.done [#allocation5], 1024
    $region37: #{inference_network_forward.1} parent=1 // pred_fallthru
      _
    // Predicated region
    $region38: #{inference_network_forward.1} parent=1 // pred_check
      _
    $region39: #{inference_network_forward.1} parent=1 // pred_check_branch
      %70 = sbr.rel (0) target = $region41
    $region40: #{inference_network_forward.1} parent=1 // pred_region
      %72 = dma.done [#allocation5], 1024
    $region41: #{inference_network_forward.1} parent=1 // pred_fallthru
      _
    %v73 = vld [vmem:[%s0] sm:$0xf]
    %v74 = vld [vmem:[#allocation2] sm:$0xf]
    %v75 = vld [vmem:[#allocation2 + $0x4] sm:$0xf]
    %v76 = vld [vmem:[#allocation2 + $0x8] sm:$0xf]
    %v77 = vld [vmem:[#allocation2 + $0xc] sm:$0xf]
    %v78 = vld [vmem:[#allocation2 + $0x10] sm:$0xf]
    %v79 = vld [vmem:[#allocation2 + $0x14] sm:$0xf]
    %v80 = vld [vmem:[#allocation2 + $0x18] sm:$0xf]
    %v81 = vld [vmem:[#allocation2 + $0x1c] sm:$0xf]
    %v82 = vld [vmem:[#allocation2 + $0x20] sm:$0xf]
    %v83 = vld [vmem:[#allocation2 + $0x24] sm:$0xf]
    %v84 = vld [vmem:[#allocation2 + $0x28] sm:$0xf]
    %v85 = vld [vmem:[#allocation2 + $0x2c] sm:$0xf]
    %v86 = vld [vmem:[#allocation2 + $0x30] sm:$0xf]
    %v87 = vld [vmem:[#allocation2 + $0x34] sm:$0xf]
    %v88 = vld [vmem:[#allocation2 + $0x38] sm:$0xf]
    %v89 = vld [vmem:[#allocation2 + $0x3c] sm:$0xf]
    %v90 = vld [vmem:[%s2] sm:$0x1]
    %v92 = vperm.slane %v90, 0
    %v110 = vunpack.c.l.b16 %v74
    %v111 = vunpack.c.l.b16 %v75
    %v112 = vunpack.c.l.b16 %v76
    %v113 = vunpack.c.l.b16 %v77
    %v114 = vunpack.c.l.b16 %v78
    %v115 = vunpack.c.l.b16 %v79
    %v116 = vunpack.c.l.b16 %v80
    %v117 = vunpack.c.l.b16 %v81
    %v118 = vunpack.c.l.b16 %v82
    %v119 = vunpack.c.l.b16 %v83
    %v120 = vunpack.c.l.b16 %v84
    %v121 = vunpack.c.l.b16 %v85
    %v122 = vunpack.c.l.b16 %v86
    %v123 = vunpack.c.l.b16 %v87
    %v124 = vunpack.c.l.b16 %v88
    %v125 = vunpack.c.l.b16 %v89
    %v126 = vpack.c.b16 %v111, %v110
    %v127 = vpack.c.b16 %v113, %v112
    %v128 = vpack.c.b16 %v115, %v114
    %v129 = vpack.c.b16 %v117, %v116
    %v130 = vpack.c.b16 %v119, %v118
    %v131 = vpack.c.b16 %v121, %v120
    %v132 = vpack.c.b16 %v123, %v122
    %v133 = vpack.c.b16 %v125, %v124
    %142 = vmatpush.bf16.msra.mxu0 %v133
    %143 = vmatpush.bf16.msra.mxu0 %v132
    %144 = vmatpush.bf16.msra.mxu0 %v131
    %145 = vmatpush.bf16.msra.mxu0 %v130
    %146 = vmatpush.bf16.msra.mxu0 %v129
    %147 = vmatpush.bf16.msra.mxu0 %v128
    %148 = vmatpush.bf16.msra.mxu0 %v127
    %149 = vmatpush.bf16.msra.mxu0 %v126
    %150 = vmatmul.bf16.gmra.mxu0 %v73
    %v151 = vpop.f32.mrf.mxu0
    %v152 = vadd.f32 %v92, %v151
    %v153 = vpop.f32.mrf.mxu0
    %154 = vdwg.mxu0
    %vm155 = vcmp.gt.f32.partialorder %v152, 20.0
    %v156 = vmin.f32 %v152, 20.0
    %v157 = vmul.f32 %v156, 1.442695
    %v158 = vpow.pop %v157
    %v159 = vadd.f32 %v158, 1.0
    %v160 = vlog2.pop %v159
    %v161 = vmul.f32 %v160, 0.6931472
    %v162 = vmul.f32 -0.5, %v158
    %v163 = vadd.f32 %v162, 1.0
    %v164 = vmul.f32 %v163, %v158
    %v165 = vand.u32 2147483647, %v158
    %vm166 = vcmp.lt.f32.partialorder %v165, 0.0004427343
    %v167 = vsel %vm166, %v164, %v161
    %v168 = vsel %vm155, %v152, %v167
    %v169 = vpack.c.bf16 %v168, %v168
    %v170 = vld [vmem:[#allocation4] sm:$0xf]
    %v171 = vld [vmem:[#allocation4 + $0x4] sm:$0xf]
    %v172 = vld [vmem:[#allocation4 + $0x8] sm:$0xf]
    %v173 = vld [vmem:[#allocation4 + $0xc] sm:$0xf]
    %v174 = vld [vmem:[#allocation4 + $0x10] sm:$0xf]
    %v175 = vld [vmem:[#allocation4 + $0x14] sm:$0xf]
    %v176 = vld [vmem:[#allocation4 + $0x18] sm:$0xf]
    %v177 = vld [vmem:[#allocation4 + $0x1c] sm:$0xf]
    %v178 = vld [vmem:[#allocation4 + $0x20] sm:$0xf]
    %v179 = vld [vmem:[#allocation4 + $0x24] sm:$0xf]
    %v180 = vld [vmem:[#allocation4 + $0x28] sm:$0xf]
    %v181 = vld [vmem:[#allocation4 + $0x2c] sm:$0xf]
    %v182 = vld [vmem:[#allocation4 + $0x30] sm:$0xf]
    %v183 = vld [vmem:[#allocation4 + $0x34] sm:$0xf]
    %v184 = vld [vmem:[#allocation4 + $0x38] sm:$0xf]
    %v185 = vld [vmem:[#allocation4 + $0x3c] sm:$0xf]
    %v186 = vld [vmem:[%s4] sm:$0x1]
    %v188 = vperm.slane %v186, 0
    %v206 = vunpack.c.l.b16 %v170
    %v207 = vunpack.c.l.b16 %v171
    %v208 = vunpack.c.l.b16 %v172
    %v209 = vunpack.c.l.b16 %v173
    %v210 = vunpack.c.l.b16 %v174
    %v211 = vunpack.c.l.b16 %v175
    %v212 = vunpack.c.l.b16 %v176
    %v213 = vunpack.c.l.b16 %v177
    %v214 = vunpack.c.l.b16 %v178
    %v215 = vunpack.c.l.b16 %v179
    %v216 = vunpack.c.l.b16 %v180
    %v217 = vunpack.c.l.b16 %v181
    %v218 = vunpack.c.l.b16 %v182
    %v219 = vunpack.c.l.b16 %v183
    %v220 = vunpack.c.l.b16 %v184
    %v221 = vunpack.c.l.b16 %v185
    %v222 = vpack.c.b16 %v207, %v206
    %v223 = vpack.c.b16 %v209, %v208
    %v224 = vpack.c.b16 %v211, %v210
    %v225 = vpack.c.b16 %v213, %v212
    %v226 = vpack.c.b16 %v215, %v214
    %v227 = vpack.c.b16 %v217, %v216
    %v228 = vpack.c.b16 %v219, %v218
    %v229 = vpack.c.b16 %v221, %v220
    %238 = vmatpush.bf16.msra.mxu0 %v229
    %239 = vmatpush.bf16.msra.mxu0 %v228
    %240 = vmatpush.bf16.msra.mxu0 %v227
    %241 = vmatpush.bf16.msra.mxu0 %v226
    %242 = vmatpush.bf16.msra.mxu0 %v225
    %243 = vmatpush.bf16.msra.mxu0 %v224
    %244 = vmatpush.bf16.msra.mxu0 %v223
    %245 = vmatpush.bf16.msra.mxu0 %v222
    %246 = vmatmul.bf16.gmra.mxu0 %v169
    %v247 = vpop.f32.mrf.mxu0
    %v248 = vadd.f32 %v188, %v247
    %v249 = vpop.f32.mrf.mxu0
    %250 = vdwg.mxu0
    %vm251 = vcmp.gt.f32.partialorder %v248, 20.0
    %v252 = vmin.f32 %v248, 20.0
    %v253 = vmul.f32 %v252, 1.442695
    %v254 = vpow.pop %v253
    %v255 = vadd.f32 %v254, 1.0
    %v256 = vlog2.pop %v255
    %v257 = vmul.f32 %v256, 0.6931472
    %v258 = vmul.f32 -0.5, %v254
    %v259 = vadd.f32 %v258, 1.0
    %v260 = vmul.f32 %v259, %v254
    %v261 = vand.u32 2147483647, %v254
    %vm262 = vcmp.lt.f32.partialorder %v261, 0.0004427343
    %v263 = vsel %vm262, %v260, %v257
    %v264 = vsel %vm251, %v248, %v263
    %v265 = vpack.c.bf16 %v264, %v264
    %v266 = vld [vmem:[#allocation6] sm:$0xf]
    %v267 = vld [vmem:[#allocation6 + $0x4] sm:$0xf]
    %v268 = vld [vmem:[#allocation6 + $0x8] sm:$0xf]
    %v269 = vld [vmem:[#allocation6 + $0xc] sm:$0xf]
    %v270 = vld [vmem:[#allocation6 + $0x10] sm:$0xf]
    %v271 = vld [vmem:[#allocation6 + $0x14] sm:$0xf]
    %v272 = vld [vmem:[#allocation6 + $0x18] sm:$0xf]
    %v273 = vld [vmem:[#allocation6 + $0x1c] sm:$0xf]
    %v274 = vld [vmem:[#allocation6 + $0x20] sm:$0xf]
    %v275 = vld [vmem:[#allocation6 + $0x24] sm:$0xf]
    %v276 = vld [vmem:[#allocation6 + $0x28] sm:$0xf]
    %v277 = vld [vmem:[#allocation6 + $0x2c] sm:$0xf]
    %v278 = vld [vmem:[#allocation6 + $0x30] sm:$0xf]
    %v279 = vld [vmem:[#allocation6 + $0x34] sm:$0xf]
    %v280 = vld [vmem:[#allocation6 + $0x38] sm:$0xf]
    %v281 = vld [vmem:[#allocation6 + $0x3c] sm:$0xf]
    %v282 = vld [vmem:[%s6] sm:$0x1]
    %v284 = vperm.slane %v282, 0
    %v302 = vunpack.c.l.b16 %v266
    %v303 = vunpack.c.l.b16 %v267
    %v304 = vunpack.c.l.b16 %v268
    %v305 = vunpack.c.l.b16 %v269
    %v306 = vunpack.c.l.b16 %v270
    %v307 = vunpack.c.l.b16 %v271
    %v308 = vunpack.c.l.b16 %v272
    %v309 = vunpack.c.l.b16 %v273
    %v310 = vunpack.c.l.b16 %v274
    %v311 = vunpack.c.l.b16 %v275
    %v312 = vunpack.c.l.b16 %v276
    %v313 = vunpack.c.l.b16 %v277
    %v314 = vunpack.c.l.b16 %v278
    %v315 = vunpack.c.l.b16 %v279
    %v316 = vunpack.c.l.b16 %v280
    %v317 = vunpack.c.l.b16 %v281
    %v318 = vpack.c.b16 %v303, %v302
    %v319 = vpack.c.b16 %v305, %v304
    %v320 = vpack.c.b16 %v307, %v306
    %v321 = vpack.c.b16 %v309, %v308
    %v322 = vpack.c.b16 %v311, %v310
    %v323 = vpack.c.b16 %v313, %v312
    %v324 = vpack.c.b16 %v315, %v314
    %v325 = vpack.c.b16 %v317, %v316
    %334 = vmatpush.bf16.msra.mxu0 %v325
    %335 = vmatpush.bf16.msra.mxu0 %v324
    %336 = vmatpush.bf16.msra.mxu0 %v323
    %337 = vmatpush.bf16.msra.mxu0 %v322
    %338 = vmatpush.bf16.msra.mxu0 %v321
    %339 = vmatpush.bf16.msra.mxu0 %v320
    %340 = vmatpush.bf16.msra.mxu0 %v319
    %341 = vmatpush.bf16.msra.mxu0 %v318
    %342 = vmatmul.bf16.gmra.mxu0 %v265
    %v343 = vpop.f32.mrf.mxu0
    %v344 = vadd.f32 %v284, %v343
    %v345 = vpop.f32.mrf.mxu0
    %346 = vdwg.mxu0
    %347 = vst [vmem:[%s7] sm:$0xff] %v344
    // Predicated region
    $region42: #{inference_network_forward.1} parent=1 // pred_check
      _
    $region43: #{inference_network_forward.1} parent=1 // pred_check_branch
      %349 = sbr.rel (0) target = $region45
    $region44: #{inference_network_forward.1} parent=1 // pred_region
      _
    $region45: #{inference_network_forward.1} parent=1 // pred_fallthru
      _
    // Predicated region
    $region46: #{inference_network_forward.1} parent=1 // pred_check
      _
    $region47: #{inference_network_forward.1} parent=1 // pred_check_branch
      %351 = sbr.rel (0) target = $region49
    $region48: #{inference_network_forward.1} parent=1 // pred_region
      _
    $region49: #{inference_network_forward.1} parent=1 // pred_fallthru
      _
    %352 = vsyncpa [#allocation3], 1
    %353 = vsyncpa [#allocation5], 1

</llo_original>
